<compile_context>
chip_gen: v6e
topology: v6e:2x2x1
jax: 0.10.0
libtpu: 0.0.40
codegen_flags: <defaults>
</compile_context>

<pallas_src>
import functools

import jax
import jax.numpy as jnp
from jax.experimental import pallas as pl
from jax.experimental.pallas import tpu as pltpu


def _round_up(x: int, m: int) -> int:
    return ((x + m - 1) // m) * m


def _divisor_tile(total: int, target: int, quantum: int = 128) -> int:
    """Largest multiple of `quantum` that divides `total` and is <= target.

    `total` must itself be a multiple of `quantum` (our padded feature dims
    always are), so this terminates with at least `quantum`.
    """
    target = max(quantum, min(total, target))
    t = (target // quantum) * quantum
    while total % t != 0:
        t -= quantum
    return t


def _vmem_cap_bytes() -> int:
    """Usable VMEM budget for this generation (capacity minus headroom)."""
    phys = 64 * 1024 * 1024          # conservative fallback (v7x per-TC size)
    try:
        info = pltpu.get_tpu_info()
        phys = int(getattr(info, "vmem_capacity_bytes", phys)) or phys
    except Exception:
        pass
    # ~18% headroom for compiler-internal scratch:
    #   ~105 MiB on v5e/v6e (128 MiB phys), ~52 MiB on v7x (64 MiB phys).
    return max(int(phys * 0.82), 16 * 1024 * 1024)


def _pick_tm(batch: int, block_m: int) -> int:
    """Batch row-tile: >=16 (bf16 packing), 256-aligned for large batches,
    and >= 2 grid steps for batches > 256 so v7x megacore can shard."""
    block_m = max(16, (block_m // 16) * 16)
    b16 = _round_up(max(batch, 1), 16)
    if b16 <= 256:
        return min(b16, block_m)
    tm = min(block_m, _round_up(pl.cdiv(b16, 2), 256))
    return max(16, tm)


def _vmem_needed(tm, th, tn, in_p, x_bytes, out_bytes, cdt) -> int:
    db = 2  # Pallas double-buffers pipelined inputs / outputs by default
    weights = db * (in_p * th + th * tn) * cdt          # W1, W2 k-chunks
    biases = db * (th + tn) * 4                         # b1, b2 chunks (f32)
    io = db * (tm * in_p * x_bytes + tm * tn * out_bytes)
    acc = tm * tn * 4                                   # f32 accumulator
    temps = tm * th * 4 + tm * in_p * cdt               # f32 h chunk + x cast
    return weights + biases + io + acc + temps


def _fit_tiles(batch, in_p, hid_p, out_p, x_bytes, out_bytes, cdt, cap,
               block_m):
    tm = _pick_tm(batch, block_m)
    th = _divisor_tile(hid_p, 512)
    tn = _divisor_tile(out_p, out_p if out_p <= 2048 else 1024)
    # Shrink until the budget fits: hidden chunk first (cheapest to shrink),
    # then the batch tile, and only then the lane-dense output tile.
    while _vmem_needed(tm, th, tn, in_p, x_bytes, out_bytes, cdt) > cap:
        if th > 128:
            th = _divisor_tile(hid_p, th - 128)
        elif tm > 16:
            tm = max(16, ((tm // 2) // 16) * 16)
        elif tn > 128:
            tn = _divisor_tile(out_p, tn - 128)
        else:
            break  # smallest tiles already; let the compiler do its best
    return tm, th, tn


def mlp_kernel(x_ref, w1_ref, b1_ref, w2_ref, b2_ref, o_ref, acc_ref):
    k = pl.program_id(2)

    @pl.when(k == 0)
    def _():
        acc_ref[...] = jnp.zeros_like(acc_ref)

    # hidden chunk: relu(x @ W1[:, k-tile] + b1[k-tile])   (MXU, f32 acc)
    x = x_ref[...].astype(w1_ref.dtype)
    h = jnp.dot(x, w1_ref[...], preferred_element_type=jnp.float32)
    h = jnp.maximum(h + b1_ref[...], 0.0)

    # accumulate this hidden chunk's contribution to the second matmul
    acc_ref[...] += jnp.dot(h.astype(w2_ref.dtype), w2_ref[...],
                            preferred_element_type=jnp.float32)

    @pl.when(k == pl.num_programs(2) - 1)
    def _():
        o_ref[...] = (acc_ref[...] + b2_ref[...]).astype(o_ref.dtype)


def prepare_mlp_params(w1, b1, w2, b2, compute_dtype=jnp.bfloat16):
    """One-time parameter prep (hoisted out of the per-call hot path).

    Pads feature dims to 128-lane multiples and casts weights to the MXU
    compute dtype.  Zero padding of W1's extra rows/cols, b1's extra cols
    and W2's extra rows is what makes the padded regions contribute exactly
    0 to the result — keep both invariants if this is refactored.

    w1: (in_dim, hidden)   b1: (hidden,) or (1, hidden)
    w2: (hidden, out_dim)  b2: (out_dim,) or (1, out_dim)
    """
    in_dim, hidden = w1.shape
    out_dim = w2.shape[1]
    in_p = _round_up(in_dim, 128)
    hid_p = _round_up(hidden, 128)
    out_p = _round_up(out_dim, 128)

    b1 = jnp.reshape(b1, (1, hidden))
    b2 = jnp.reshape(b2, (1, out_dim))

    w1p = jnp.pad(w1.astype(compute_dtype),
                  ((0, in_p - in_dim), (0, hid_p - hidden)))
    b1p = jnp.pad(b1.astype(jnp.float32), ((0, 0), (0, hid_p - hidden)))
    w2p = jnp.pad(w2.astype(compute_dtype),
                  ((0, hid_p - hidden), (0, out_p - out_dim)))
    b2p = jnp.pad(b2.astype(jnp.float32), ((0, 0), (0, out_p - out_dim)))
    return w1p, b1p, w2p, b2p, out_dim


def mlp_forward(x, w1p, b1p, w2p, b2p, *, out_dim, block_m=512):
    """Fused MLP forward: relu(x @ W1 + b1) @ W2 + b2.

    x   : (B, in_dim)   (any float dtype; cast to bf16 inside the kernel)
    w1p : (in_p, hid_p) pre-padded / pre-cast (see prepare_mlp_params)
    w2p : (hid_p, out_p)
    Returns (B, out_dim) in x.dtype.
    """
    B, in_dim = x.shape
    in_p, hid_p = w1p.shape
    out_p = w2p.shape[1]
    out_dtype = x.dtype

    cdt = jnp.dtype(w1p.dtype).itemsize
    x_bytes = jnp.dtype(x.dtype).itemsize
    out_bytes = jnp.dtype(out_dtype).itemsize

    cap = _vmem_cap_bytes()
    tm, th, tn = _fit_tiles(B, in_p, hid_p, out_p, x_bytes, out_bytes, cdt,
                            cap, block_m)

    num_m = pl.cdiv(B, tm)
    num_n = out_p // tn
    num_k = hid_p // th
    b_p = num_m * tm

    # Pad x only when actually required (ragged batch tile / unaligned K).
    if b_p != B or in_p != in_dim:
        x = jnp.pad(x, ((0, b_p - B), (0, in_p - in_dim)))

    needed = _vmem_needed(tm, th, tn, in_p, x_bytes, out_bytes, cdt)
    vmem_limit = int(min(cap, max(needed + needed // 4, 32 * 1024 * 1024)))

    cost = pl.CostEstimate(
        flops=2 * b_p * (num_n * in_p * hid_p + hid_p * out_p),
        transcendentals=0,
        bytes_accessed=(b_p * in_p * x_bytes
                        + num_m * num_n * in_p * hid_p * cdt
                        + num_m * hid_p * out_p * cdt
                        + (hid_p + out_p) * 4
                        + b_p * out_p * out_bytes),
    )

    out_padded = pl.pallas_call(
        mlp_kernel,
        out_shape=jax.ShapeDtypeStruct((b_p, out_p), out_dtype),
        grid_spec=pltpu.PrefetchScalarGridSpec(
            num_scalar_prefetch=0,
            grid=(num_m, num_n, num_k),
            in_specs=[
                pl.BlockSpec((tm, in_p), lambda i, j, k: (i, 0)),  # x row tile
                pl.BlockSpec((in_p, th), lambda i, j, k: (0, k)),  # W1 k-chunk
                pl.BlockSpec((1, th),    lambda i, j, k: (0, k)),  # b1 k-chunk
                pl.BlockSpec((th, tn),   lambda i, j, k: (k, j)),  # W2 k-chunk
                pl.BlockSpec((1, tn),    lambda i, j, k: (0, j)),  # b2 n-chunk
            ],
            out_specs=pl.BlockSpec((tm, tn), lambda i, j, k: (i, j)),
            scratch_shapes=[pltpu.VMEM((tm, tn), jnp.float32)],
        ),
        compiler_params=pltpu.CompilerParams(
            dimension_semantics=("parallel", "parallel", "arbitrary"),
            vmem_limit_bytes=vmem_limit,
        ),
        cost_estimate=cost,
    )(x, w1p, b1p, w2p, b2p)

    if b_p != B or out_p != out_dim:
        out_padded = out_padded[:B, :out_dim]
    return out_padded


if __name__ == "__main__":
    # Shapes implied by MLP(input_dim, output_dim, hidden_dim) on a
    # (batch, input_dim) input.  Toy sizes; the kernel pads feature dims to
    # 128 lanes, tiles batch/hidden/out dims, so it also handles big shapes.
    batch, input_dim, hidden_dim, output_dim = 8, 32, 64, 16

    key = jax.random.PRNGKey(0)
    kx, k1w, k1b, k2w, k2b = jax.random.split(key, 5)

    def init_linear(kw, kb, fan_in, fan_out):
        # Mirrors torch.nn.Linear default init: U(-1/sqrt(in), 1/sqrt(in)).
        bound = 1.0 / (fan_in ** 0.5)
        w = jax.random.uniform(kw, (fan_in, fan_out), jnp.float32,
                               minval=-bound, maxval=bound)
        b = jax.random.uniform(kb, (1, fan_out), jnp.float32,
                               minval=-bound, maxval=bound)
        return w, b

    x = jax.random.normal(kx, (batch, input_dim), jnp.float32)
    w1, b1 = init_linear(k1w, k1b, input_dim, hidden_dim)
    w2, b2 = init_linear(k2w, k2b, hidden_dim, output_dim)

    # One-time parameter prep (padding + bf16 cast) — out of the hot path.
    w1p, b1p, w2p, b2p, out_dim = prepare_mlp_params(w1, b1, w2, b2)

    fwd = jax.jit(functools.partial(mlp_forward, out_dim=out_dim))
    out = fwd(x, w1p, b1p, w2p, b2p)
    jax.block_until_ready(out)

    # Reference check in plain f32 JAX (kernel computes in bf16 on the MXU
    # with f32 accumulation, so use a bf16-appropriate tolerance).
    ref = jnp.maximum(x @ w1 + b1, 0.0) @ w2 + b2
    assert out.shape == (batch, output_dim), out.shape
    assert jnp.allclose(out, ref, atol=5e-2, rtol=5e-2), \
        float(jnp.max(jnp.abs(out - ref)))

    print("KERNEL_OK")
</pallas_src>

<mosaic_0001>
module attributes {stable_mosaic.version = 11 : i64} {
  func.func @mlp_kernel(%arg0: i32, %arg1: i32, %arg2: i32, %arg3: memref<16x128xf32, #tpu.memory_space<vmem>>, %arg4: memref<128x128xbf16, #tpu.memory_space<vmem>>, %arg5: memref<1x128xf32, #tpu.memory_space<vmem>>, %arg6: memref<128x128xbf16, #tpu.memory_space<vmem>>, %arg7: memref<1x128xf32, #tpu.memory_space<vmem>>, %arg8: memref<16x128xf32, #tpu.memory_space<vmem>>, %arg9: memref<16x128xf32, #tpu.memory_space<vmem>>) attributes {dimension_semantics = [#tpu.dimension_semantics<parallel>, #tpu.dimension_semantics<parallel>, #tpu.dimension_semantics<arbitrary>], iteration_bounds = array<i64: 1, 1, 1>, scalar_prefetch = 0 : i64, scratch_operands = 1 : i64, tpu.core_type = #tpu.core_type<tc>, window_params = [{transform_indices = @transform_0, window_bounds = array<i64: 16, 128>}, {transform_indices = @transform_1, window_bounds = array<i64: 128, 128>}, {transform_indices = @transform_2, window_bounds = array<i64: 1, 128>}, {transform_indices = @transform_3, window_bounds = array<i64: 128, 128>}, {transform_indices = @transform_4, window_bounds = array<i64: 1, 128>}, {transform_indices = @transform_5, window_bounds = array<i64: 16, 128>}]} {
    %c0_i32 = arith.constant 0 : i32
    %0 = arith.cmpi eq, %arg2, %c0_i32 : i32
    %1 = arith.extui %0 : i1 to i32
    %c0_i32_0 = arith.constant 0 : i32
    %2 = arith.cmpi ne, %1, %c0_i32_0 : i32
    scf.if %2 {
      %cst_16 = arith.constant 0.000000e+00 : f32
      %21 = vector.broadcast %cst_16 : f32 to vector<16x128xf32>
      %c0_17 = arith.constant 0 : index
      %c0_18 = arith.constant 0 : index
      %22 = vector.load %arg9[%c0_17, %c0_18] : memref<16x128xf32, #tpu.memory_space<vmem>>, vector<16x128xf32>
      tpu.vector_store %arg9[%c0_17, %c0_18], %21 {strides = array<i32>} : memref<16x128xf32, #tpu.memory_space<vmem>>, vector<16x128xf32>,
    } else {
    }
    %c0 = arith.constant 0 : index
    %c0_1 = arith.constant 0 : index
    %3 = vector.load %arg3[%c0, %c0_1] : memref<16x128xf32, #tpu.memory_space<vmem>>, vector<16x128xf32>
    %4 = arith.truncf %3 : vector<16x128xf32> to vector<16x128xbf16>
    %c0_2 = arith.constant 0 : index
    %c0_3 = arith.constant 0 : index
    %5 = vector.load %arg4[%c0_2, %c0_3] : memref<128x128xbf16, #tpu.memory_space<vmem>>, vector<128x128xbf16>
    %cst = arith.constant dense<0.000000e+00> : vector<16x128xf32>
    %6 = tpu.matmul %4, %5, %cst {dimension_numbers = #tpu.dot_dimension_numbers<[1], [0], [0], [1], [0, 0, 1, 1], [], []>} : vector<16x128xbf16>, vector<128x128xbf16>, vector<16x128xf32> -> vector<16x128xf32>
    %c0_4 = arith.constant 0 : index
    %c0_5 = arith.constant 0 : index
    %7 = vector.load %arg5[%c0_4, %c0_5] : memref<1x128xf32, #tpu.memory_space<vmem>>, vector<1x128xf32>
    %8 = vector.broadcast %7 : vector<1x128xf32> to vector<16x128xf32>
    %9 = arith.addf %6, %8 : vector<16x128xf32>
    %cst_6 = arith.constant 0.000000e+00 : f32
    %10 = vector.broadcast %cst_6 : f32 to vector<16x128xf32>
    %11 = arith.maximumf %9, %10 : vector<16x128xf32>
    %c0_7 = arith.constant 0 : index
    %c0_8 = arith.constant 0 : index
    %12 = vector.load %arg9[%c0_7, %c0_8] : memref<16x128xf32, #tpu.memory_space<vmem>>, vector<16x128xf32>
    %13 = arith.truncf %11 : vector<16x128xf32> to vector<16x128xbf16>
    %c0_9 = arith.constant 0 : index
    %c0_10 = arith.constant 0 : index
    %14 = vector.load %arg6[%c0_9, %c0_10] : memref<128x128xbf16, #tpu.memory_space<vmem>>, vector<128x128xbf16>
    %cst_11 = arith.constant dense<0.000000e+00> : vector<16x128xf32>
    %15 = tpu.matmul %13, %14, %cst_11 {dimension_numbers = #tpu.dot_dimension_numbers<[1], [0], [0], [1], [0, 0, 1, 1], [], []>} : vector<16x128xbf16>, vector<128x128xbf16>, vector<16x128xf32> -> vector<16x128xf32>
    %16 = arith.addf %12, %15 : vector<16x128xf32>
    %c0_12 = arith.constant 0 : index
    %c0_13 = arith.constant 0 : index
    %17 = vector.load %arg9[%c0_12, %c0_13] : memref<16x128xf32, #tpu.memory_space<vmem>>, vector<16x128xf32>
    tpu.vector_store %arg9[%c0_12, %c0_13], %16 {strides = array<i32>} : memref<16x128xf32, #tpu.memory_space<vmem>>, vector<16x128xf32>,
    %c0_i32_14 = arith.constant 0 : i32
    %18 = arith.cmpi eq, %arg2, %c0_i32_14 : i32
    %19 = arith.extui %18 : i1 to i32
    %c0_i32_15 = arith.constant 0 : i32
    %20 = arith.cmpi ne, %19, %c0_i32_15 : i32
    scf.if %20 {
      %c0_16 = arith.constant 0 : index
      %c0_17 = arith.constant 0 : index
      %21 = vector.load %arg9[%c0_16, %c0_17] : memref<16x128xf32, #tpu.memory_space<vmem>>, vector<16x128xf32>
      %c0_18 = arith.constant 0 : index
      %c0_19 = arith.constant 0 : index
      %22 = vector.load %arg7[%c0_18, %c0_19] : memref<1x128xf32, #tpu.memory_space<vmem>>, vector<1x128xf32>
      %23 = vector.broadcast %22 : vector<1x128xf32> to vector<16x128xf32>
      %24 = arith.addf %21, %23 : vector<16x128xf32>
      %c0_20 = arith.constant 0 : index
      %c0_21 = arith.constant 0 : index
      %25 = vector.load %arg8[%c0_20, %c0_21] : memref<16x128xf32, #tpu.memory_space<vmem>>, vector<16x128xf32>
      tpu.vector_store %arg8[%c0_20, %c0_21], %24 {strides = array<i32>} : memref<16x128xf32, #tpu.memory_space<vmem>>, vector<16x128xf32>,
    } else {
    }
    return
  }
  func.func @transform_0(%arg0: i32, %arg1: i32, %arg2: i32) -> (i32, i32) {
    %c0_i32 = arith.constant 0 : i32
    %c0_i32_0 = arith.constant 0 : i32
    return %arg0, %c0_i32 : i32, i32
  }
  func.func @transform_1(%arg0: i32, %arg1: i32, %arg2: i32) -> (i32, i32) {
    %c0_i32 = arith.constant 0 : i32
    %c0_i32_0 = arith.constant 0 : i32
    return %c0_i32, %arg2 : i32, i32
  }
  func.func @transform_2(%arg0: i32, %arg1: i32, %arg2: i32) -> (i32, i32) {
    %c0_i32 = arith.constant 0 : i32
    %c0_i32_0 = arith.constant 0 : i32
    return %c0_i32, %arg2 : i32, i32
  }
  func.func @transform_3(%arg0: i32, %arg1: i32, %arg2: i32) -> (i32, i32) {
    %c0_i32 = arith.constant 0 : i32
    return %arg2, %arg1 : i32, i32
  }
  func.func @transform_4(%arg0: i32, %arg1: i32, %arg2: i32) -> (i32, i32) {
    %c0_i32 = arith.constant 0 : i32
    %c0_i32_0 = arith.constant 0 : i32
    return %c0_i32, %arg1 : i32, i32
  }
  func.func @transform_5(%arg0: i32, %arg1: i32, %arg2: i32) -> (i32, i32) {
    %c0_i32 = arith.constant 0 : i32
    return %arg0, %arg1 : i32, i32
  }
}

</mosaic_0001>

<llo_original>
// kernel: mlp_forward.1
$region0: #{mlp_forward.1}
  #allocation0 [shape = 'u32[]', space=smem, size = 0x4, offset = 0x4, fixed_abs, tag = 'smem constant byte address 0x4 - core index']
  #allocation1 [shape = 'u32[144,128]{1,0:T(1,128)}', space=vmem, size = 0x12000, scoped, tag = 'internal scratch']
  #allocation2 [shape = 'f32[16,128]{1,0:T(8,128)}', space=vmem, size = 0x2000, scoped, tag = 'scratch operand']
  %s0 = inlined_call_operand.vmem [shape: f32[16,128], index: 0, kind: input, shape index: {}]
  %s1 = inlined_call_operand.hbm [shape: bf16[128,128], index: 1, kind: input, shape index: {}]
  %s2 = inlined_call_operand.vmem [shape: f32[1,128], index: 2, kind: input, shape index: {}]
  %s3 = inlined_call_operand.hbm [shape: bf16[128,128], index: 3, kind: input, shape index: {}]
  %s4 = inlined_call_operand.vmem [shape: f32[1,128], index: 4, kind: input, shape index: {}]
  %s5 = inlined_call_operand.vmem [shape: f32[16,128], index: 5, kind: output, shape index: {}]
  %s6 = sld [smem:[#allocation0]]
  $region46: #{mlp_forward.1} parent=0
    _
  %s8 = ssub.s32 1, %s6
  %s9 = scalar_select 0, %s8, %s6
  $region1: #{mlp_forward.1} parent=0
    #allocation3 [shape = 'u8[32768]{0}', space=vmem, size = 0x8000, scoped, tag = 'input window, operand 1, single buffered']
    #allocation4 [shape = 's32[1]{0}', space=sflag, size = 0x4, scoped, tag = 'scoped memory for mlp_forward.1']
    #allocation5 [shape = 'u8[32768]{0}', space=vmem, size = 0x8000, scoped, tag = 'input window, operand 3, single buffered']
    #allocation6 [shape = 's32[1]{0}', space=sflag, size = 0x4, scoped, tag = 'scoped memory for mlp_forward.1']
    %10 = vsyncpa [#allocation4], 0
    %11 = vsyncpa [#allocation6], 0
    // Predicated region
    $region2: #{mlp_forward.1} parent=1 // pred_check
      _
    $region3: #{mlp_forward.1} parent=1 // pred_check_branch
      %13 = sbr.rel (0) target = $region5
    $region4: #{mlp_forward.1} parent=1 // pred_region
      _
    $region5: #{mlp_forward.1} parent=1 // pred_fallthru
      _
    // Predicated region
    $region6: #{mlp_forward.1} parent=1 // pred_check
      _
    $region7: #{mlp_forward.1} parent=1 // pred_check_branch
      %15 = sbr.rel (0) target = $region9
    $region8: #{mlp_forward.1} parent=1 // pred_region
      %s17 = ssub.s32 1024, 1024
      %18 = vsyncadd [#allocation4], %s17
      %s19 = sshll.u32 [#allocation3], 4
      %s20 = int_to_ptr.vmem [resolvable:$true] %s19
      %25 = dma.hbm_to_vmem [thread:$0]  %s1, 1024, %s20, [#allocation4], 64, 64, 4
    $region9: #{mlp_forward.1} parent=1 // pred_fallthru
      _
    // Predicated region
    $region10: #{mlp_forward.1} parent=1 // pred_check
      _
    $region11: #{mlp_forward.1} parent=1 // pred_check_branch
      %27 = sbr.rel (0) target = $region13
    $region12: #{mlp_forward.1} parent=1 // pred_region
      _
    $region13: #{mlp_forward.1} parent=1 // pred_fallthru
      _
    // Predicated region
    $region14: #{mlp_forward.1} parent=1 // pred_check
      _
    $region15: #{mlp_forward.1} parent=1 // pred_check_branch
      %29 = sbr.rel (0) target = $region17
    $region16: #{mlp_forward.1} parent=1 // pred_region
      %s31 = ssub.s32 1024, 1024
      %32 = vsyncadd [#allocation6], %s31
      %s33 = sshll.u32 [#allocation5], 4
      %s34 = int_to_ptr.vmem [resolvable:$true] %s33
      %39 = dma.hbm_to_vmem [thread:$0]  %s3, 1024, %s34, [#allocation6], 64, 64, 4
    $region17: #{mlp_forward.1} parent=1 // pred_fallthru
      _
    // Predicated region
    $region18: #{mlp_forward.1} parent=1 // pred_check
      _
    $region19: #{mlp_forward.1} parent=1 // pred_check_branch
      %41 = sbr.rel (0) target = $region21
    $region20: #{mlp_forward.1} parent=1 // pred_region
      _
    $region21: #{mlp_forward.1} parent=1 // pred_fallthru
      _
    // Predicated region
    $region22: #{mlp_forward.1} parent=1 // pred_check
      _
    $region23: #{mlp_forward.1} parent=1 // pred_check_branch
      %43 = sbr.rel (0) target = $region25
    $region24: #{mlp_forward.1} parent=1 // pred_region
      %44 = dma.done [#allocation4], 1024
    $region25: #{mlp_forward.1} parent=1 // pred_fallthru
      _
    // Predicated region
    $region26: #{mlp_forward.1} parent=1 // pred_check
      _
    $region27: #{mlp_forward.1} parent=1 // pred_check_branch
      %46 = sbr.rel (0) target = $region29
    $region28: #{mlp_forward.1} parent=1 // pred_region
      %47 = dma.done [#allocation6], 1024
    $region29: #{mlp_forward.1} parent=1 // pred_fallthru
      _
    %p49 = scmp.eq.s32.totalorder 0, 0
    // Predicated region
    $region30: #{mlp_forward.1} parent=1 // pred_check
      %p50 = pneg %p49
    $region31: #{mlp_forward.1} parent=1 // pred_check_branch
      %52 = sbr.rel (%p50) target = $region33
    $region32: #{mlp_forward.1} parent=1 // pred_region
      %53 = vst [vmem:[#allocation2] sm:$0xff] 0.0
      %54 = vst [vmem:[#allocation2 + $0x8] sm:$0xff] 0.0
    $region33: #{mlp_forward.1} parent=1 // pred_fallthru
      _
    %v55 = vld [vmem:[%s0] sm:$0xff]
    %v56 = vld [vmem:[%s0 + $0x8] sm:$0xff]
    %v57 = vpack.c.bf16 %v56, %v55
    %v58 = vld [vmem:[#allocation3] sm:$0xf]
    %v59 = vld [vmem:[#allocation3 + $0x4] sm:$0xf]
    %v60 = vld [vmem:[#allocation3 + $0x8] sm:$0xf]
    %v61 = vld [vmem:[#allocation3 + $0xc] sm:$0xf]
    %v62 = vld [vmem:[#allocation3 + $0x10] sm:$0xf]
    %v63 = vld [vmem:[#allocation3 + $0x14] sm:$0xf]
    %v64 = vld [vmem:[#allocation3 + $0x18] sm:$0xf]
    %v65 = vld [vmem:[#allocation3 + $0x1c] sm:$0xf]
    %v66 = vld [vmem:[#allocation3 + $0x20] sm:$0xf]
    %v67 = vld [vmem:[#allocation3 + $0x24] sm:$0xf]
    %v68 = vld [vmem:[#allocation3 + $0x28] sm:$0xf]
    %v69 = vld [vmem:[#allocation3 + $0x2c] sm:$0xf]
    %v70 = vld [vmem:[#allocation3 + $0x30] sm:$0xf]
    %v71 = vld [vmem:[#allocation3 + $0x34] sm:$0xf]
    %v72 = vld [vmem:[#allocation3 + $0x38] sm:$0xf]
    %v73 = vld [vmem:[#allocation3 + $0x3c] sm:$0xf]
    %v74 = vld [vmem:[%s2] sm:$0x1]
    %v76 = vlaneseq
    %v77 = vshrl.u32 %v76, 7
    %v78 = vsub.s32 0, %v77
    %v79 = vrot.slane %v74, %v78
    %v97 = vunpack.c.l.b16 %v58
    %v98 = vunpack.c.l.b16 %v59
    %v99 = vunpack.c.l.b16 %v60
    %v100 = vunpack.c.l.b16 %v61
    %v101 = vunpack.c.l.b16 %v62
    %v102 = vunpack.c.l.b16 %v63
    %v103 = vunpack.c.l.b16 %v64
    %v104 = vunpack.c.l.b16 %v65
    %v105 = vunpack.c.l.b16 %v66
    %v106 = vunpack.c.l.b16 %v67
    %v107 = vunpack.c.l.b16 %v68
    %v108 = vunpack.c.l.b16 %v69
    %v109 = vunpack.c.l.b16 %v70
    %v110 = vunpack.c.l.b16 %v71
    %v111 = vunpack.c.l.b16 %v72
    %v112 = vunpack.c.l.b16 %v73
    %v113 = vpack.c.b16 %v98, %v97
    %v114 = vpack.c.b16 %v100, %v99
    %v115 = vpack.c.b16 %v102, %v101
    %v116 = vpack.c.b16 %v104, %v103
    %v117 = vpack.c.b16 %v106, %v105
    %v118 = vpack.c.b16 %v108, %v107
    %v119 = vpack.c.b16 %v110, %v109
    %v120 = vpack.c.b16 %v112, %v111
    %129 = vmatprep.subr.bf16.mxu0 0
    %130 = vmatpush1.bf16.msra.mxu0 %v120
    %131 = vmatprep.subr.bf16.mxu0 0
    %132 = vmatpush1.bf16.msra.mxu0 %v119
    %133 = vmatprep.subr.bf16.mxu0 0
    %134 = vmatpush1.bf16.msra.mxu0 %v118
    %135 = vmatprep.subr.bf16.mxu0 0
    %136 = vmatpush1.bf16.msra.mxu0 %v117
    %137 = vmatprep.subr.bf16.mxu0 0
    %138 = vmatpush1.bf16.msra.mxu0 %v116
    %139 = vmatprep.subr.bf16.mxu0 0
    %140 = vmatpush1.bf16.msra.mxu0 %v115
    %141 = vmatprep.subr.bf16.mxu0 0
    %142 = vmatpush1.bf16.msra.mxu0 %v114
    %143 = vmatprep.subr.bf16.mxu0 0
    %144 = vmatpush1.bf16.msra.mxu0 %v113
    %145 = vmatprep.subr.bf16.mxu0 0
    %146 = vmatpush2.bf16.msra.mxu0 0
    %147 = vmatprep.subr.bf16.mxu0 0
    %148 = vmatpush2.bf16.msra.mxu0 0
    %149 = vmatprep.subr.bf16.mxu0 0
    %150 = vmatpush2.bf16.msra.mxu0 0
    %151 = vmatprep.subr.bf16.mxu0 0
    %152 = vmatpush2.bf16.msra.mxu0 0
    %153 = vmatprep.subr.bf16.mxu0 0
    %154 = vmatpush2.bf16.msra.mxu0 0
    %155 = vmatprep.subr.bf16.mxu0 0
    %156 = vmatpush2.bf16.msra.mxu0 0
    %157 = vmatprep.subr.bf16.mxu0 0
    %158 = vmatpush2.bf16.msra.mxu0 0
    %159 = vmatprep.subr.bf16.mxu0 0
    %160 = vmatpush2.bf16.msra.mxu0 0
    %161 = vmatprep.mubr.bf16.mxu0 0
    %162 = vmatmul.mubr.bf16.gmra.mxu0 %v57
    %v163 = vpop.f32.mrf.mxu0
    %v164 = vadd.f32 %v79, %v163
    %v165 = vpop.f32.mrf.mxu0
    %v166 = vpop.f32.mrf.mxu0
    %v167 = vadd.f32 %v79, %v166
    %v168 = vpop.f32.mrf.mxu0
    %169 = vdwg.mxu0
    %v170 = vmax.f32 %v164, 0.0
    %v171 = vmax.f32 %v167, 0.0
    %v172 = vld [vmem:[#allocation2] sm:$0xff]
    %v173 = vld [vmem:[#allocation2 + $0x8] sm:$0xff]
    %v174 = vpack.c.bf16 %v171, %v170
    %v175 = vld [vmem:[#allocation5] sm:$0xf]
    %v176 = vld [vmem:[#allocation5 + $0x4] sm:$0xf]
    %v177 = vld [vmem:[#allocation5 + $0x8] sm:$0xf]
    %v178 = vld [vmem:[#allocation5 + $0xc] sm:$0xf]
    %v179 = vld [vmem:[#allocation5 + $0x10] sm:$0xf]
    %v180 = vld [vmem:[#allocation5 + $0x14] sm:$0xf]
    %v181 = vld [vmem:[#allocation5 + $0x18] sm:$0xf]
    %v182 = vld [vmem:[#allocation5 + $0x1c] sm:$0xf]
    %v183 = vld [vmem:[#allocation5 + $0x20] sm:$0xf]
    %v184 = vld [vmem:[#allocation5 + $0x24] sm:$0xf]
    %v185 = vld [vmem:[#allocation5 + $0x28] sm:$0xf]
    %v186 = vld [vmem:[#allocation5 + $0x2c] sm:$0xf]
    %v187 = vld [vmem:[#allocation5 + $0x30] sm:$0xf]
    %v188 = vld [vmem:[#allocation5 + $0x34] sm:$0xf]
    %v189 = vld [vmem:[#allocation5 + $0x38] sm:$0xf]
    %v190 = vld [vmem:[#allocation5 + $0x3c] sm:$0xf]
    %v207 = vunpack.c.l.b16 %v175
    %v208 = vunpack.c.l.b16 %v176
    %v209 = vunpack.c.l.b16 %v177
    %v210 = vunpack.c.l.b16 %v178
    %v211 = vunpack.c.l.b16 %v179
    %v212 = vunpack.c.l.b16 %v180
    %v213 = vunpack.c.l.b16 %v181
    %v214 = vunpack.c.l.b16 %v182
    %v215 = vunpack.c.l.b16 %v183
    %v216 = vunpack.c.l.b16 %v184
    %v217 = vunpack.c.l.b16 %v185
    %v218 = vunpack.c.l.b16 %v186
    %v219 = vunpack.c.l.b16 %v187
    %v220 = vunpack.c.l.b16 %v188
    %v221 = vunpack.c.l.b16 %v189
    %v222 = vunpack.c.l.b16 %v190
    %v223 = vpack.c.b16 %v208, %v207
    %v224 = vpack.c.b16 %v210, %v209
    %v225 = vpack.c.b16 %v212, %v211
    %v226 = vpack.c.b16 %v214, %v213
    %v227 = vpack.c.b16 %v216, %v215
    %v228 = vpack.c.b16 %v218, %v217
    %v229 = vpack.c.b16 %v220, %v219
    %v230 = vpack.c.b16 %v222, %v221
    %239 = vmatprep.subr.bf16.mxu0 0
    %240 = vmatpush1.bf16.msra.mxu0 %v230
    %241 = vmatprep.subr.bf16.mxu0 0
    %242 = vmatpush1.bf16.msra.mxu0 %v229
    %243 = vmatprep.subr.bf16.mxu0 0
    %244 = vmatpush1.bf16.msra.mxu0 %v228
    %245 = vmatprep.subr.bf16.mxu0 0
    %246 = vmatpush1.bf16.msra.mxu0 %v227
    %247 = vmatprep.subr.bf16.mxu0 0
    %248 = vmatpush1.bf16.msra.mxu0 %v226
    %249 = vmatprep.subr.bf16.mxu0 0
    %250 = vmatpush1.bf16.msra.mxu0 %v225
    %251 = vmatprep.subr.bf16.mxu0 0
    %252 = vmatpush1.bf16.msra.mxu0 %v224
    %253 = vmatprep.subr.bf16.mxu0 0
    %254 = vmatpush1.bf16.msra.mxu0 %v223
    %255 = vmatprep.subr.bf16.mxu0 0
    %256 = vmatpush2.bf16.msra.mxu0 0
    %257 = vmatprep.subr.bf16.mxu0 0
    %258 = vmatpush2.bf16.msra.mxu0 0
    %259 = vmatprep.subr.bf16.mxu0 0
    %260 = vmatpush2.bf16.msra.mxu0 0
    %261 = vmatprep.subr.bf16.mxu0 0
    %262 = vmatpush2.bf16.msra.mxu0 0
    %263 = vmatprep.subr.bf16.mxu0 0
    %264 = vmatpush2.bf16.msra.mxu0 0
    %265 = vmatprep.subr.bf16.mxu0 0
    %266 = vmatpush2.bf16.msra.mxu0 0
    %267 = vmatprep.subr.bf16.mxu0 0
    %268 = vmatpush2.bf16.msra.mxu0 0
    %269 = vmatprep.subr.bf16.mxu0 0
    %270 = vmatpush2.bf16.msra.mxu0 0
    %271 = vmatprep.mubr.bf16.mxu0 0
    %272 = vmatmul.mubr.bf16.gmra.mxu0 %v174
    %v273 = vpop.f32.mrf.mxu0
    %v274 = vadd.f32 0.0, %v273
    %v275 = vpop.f32.mrf.mxu0
    %v276 = vpop.f32.mrf.mxu0
    %v277 = vadd.f32 0.0, %v276
    %v278 = vpop.f32.mrf.mxu0
    %279 = vdwg.mxu0
    %v280 = vadd.f32 %v172, %v274
    %v281 = vadd.f32 %v173, %v277
    %282 = vst [vmem:[#allocation2] sm:$0xff] %v280
    %283 = vst [vmem:[#allocation2 + $0x8] sm:$0xff] %v281
    // Predicated region
    $region34: #{mlp_forward.1} parent=1 // pred_check
      %p284 = pneg %p49
    $region35: #{mlp_forward.1} parent=1 // pred_check_branch
      %286 = sbr.rel (%p284) target = $region37
    $region36: #{mlp_forward.1} parent=1 // pred_region
      %v287 = vld [vmem:[#allocation2] sm:$0xff]
      %v288 = vld [vmem:[#allocation2 + $0x8] sm:$0xff]
      %v289 = vld [vmem:[%s4] sm:$0x1]
      %v291 = vlaneseq
      %v292 = vshrl.u32 %v291, 7
      %v293 = vsub.s32 0, %v292
      %v294 = vrot.slane %v289, %v293
      %v296 = vadd.f32 %v287, %v294
      %v297 = vadd.f32 %v288, %v294
      %298 = vst [vmem:[%s5] sm:$0xff] %v296
      %299 = vst [vmem:[%s5 + $0x8] sm:$0xff] %v297
    $region37: #{mlp_forward.1} parent=1 // pred_fallthru
      _
    // Predicated region
    $region38: #{mlp_forward.1} parent=1 // pred_check
      _
    $region39: #{mlp_forward.1} parent=1 // pred_check_branch
      %301 = sbr.rel (0) target = $region41
    $region40: #{mlp_forward.1} parent=1 // pred_region
      _
    $region41: #{mlp_forward.1} parent=1 // pred_fallthru
      _
    // Predicated region
    $region42: #{mlp_forward.1} parent=1 // pred_check
      _
    $region43: #{mlp_forward.1} parent=1 // pred_check_branch
      %303 = sbr.rel (0) target = $region45
    $region44: #{mlp_forward.1} parent=1 // pred_region
      _
    $region45: #{mlp_forward.1} parent=1 // pred_fallthru
      _
    %304 = vsyncpa [#allocation4], 1
    %305 = vsyncpa [#allocation6], 1

</llo_original>
